<compile_context>
chip_gen: v6e
topology: v6e:2x2x1
jax: 0.10.0
libtpu: 0.0.40
codegen_flags: <defaults>
</compile_context>

<pallas_src>
import jax
import jax.numpy as jnp
import numpy as np
from jax.experimental import pallas as pl
from jax.experimental.pallas import tpu as pltpu

_LANE = 128


def _round_up(x, m):
    return (x + m - 1) // m * m


def _sublane(dtype):
    # Native sublane packing: f32 -> 8, bf16 -> 16, fp8/int8 -> 32.
    return max(8, 32 // jnp.dtype(dtype).itemsize)


def _pad_weight(w, fp):
    w_p = w.astype(jnp.float32)
    fout = w.shape[1]
    if fp != fout:
        w_p = jnp.pad(w_p, ((0, 0), (0, fp - fout)))
    return w_p


def _project_features(features, w_padded, compute_dtype):
    # P = features @ W (f32), padded to a lane-dense Fp, shipped narrow.
    p = jnp.einsum("bnf,fg->bng", features.astype(jnp.float32), w_padded,
                   preferred_element_type=jnp.float32)
    return p.astype(compute_dtype)


def _device_budgets():
    """(block_bytes_budget, vmem_limit_cap) tuned per TPU generation."""
    try:
        kind = jax.devices()[0].device_kind.lower()
    except Exception:  # pragma: no cover - defensive
        kind = ""
    if "v7" in kind:
        # v7x: only 64 MiB VMEM per TensorCore - stay conservative.
        return 12 << 20, 48 << 20
    if "v5" in kind or "v6" in kind:
        # v5e/v5p/v6e: 128 MiB VMEM - big adj row tiles keep the DMA stream
        # long and unmasked (HBM-roofline utilization rises sharply with tile).
        return 32 << 20, 96 << 20
    # Unknown / older parts: conservative.
    return 8 << 20, 32 << 20


def _graph_conv_kernel(adj_ref, p_ref, out_ref):
    # adj_ref: (TB, TM, N)  compute_dtype - adjacency row-tile, TB graphs
    # p_ref:   (TB, N,  Fp) compute_dtype - P = features @ W (lane-dense)
    # out_ref: (TB, TM, Fp) out_dtype
    # Single lane-dense batched MXU matmul with f32 accumulation, then tanh.
    acc = jnp.einsum("bmn,bnf->bmf", adj_ref[...], p_ref[...],
                     preferred_element_type=jnp.float32)
    out_ref[...] = jnp.tanh(acc).astype(out_ref.dtype)


def graph_conv0(features, adj, w, *, batch_block=None, row_block=None,
                compute_dtype=jnp.bfloat16, out_dtype=None,
                block_bytes_budget=None):
    """tanh(adj @ features @ w), batched over the leading dim (GraphConv0).

    compute_dtype: dtype adj / (features @ W) are shipped in (bf16 default,
        exact for 0/1 adjacency; pass jnp.float32 for exact PyTorch-f32
        semantics, or fp8 e4m3 on v7x for 0/1 adjacencies).
    out_dtype: output dtype (defaults to features.dtype; bf16 halves
        writeback bytes / vst pressure, useful on v5e).
    """
    B, N, Fin = features.shape
    assert adj.shape == (B, N, N), adj.shape
    Fin_w, Fout = w.shape
    assert Fin_w == Fin
    out_dtype = features.dtype if out_dtype is None else jnp.dtype(out_dtype)

    # Lane-dense output: pad Fout up to a multiple of 128 (unmasked full-width
    # vst), sliced back below.  The padding cost is paid on the tiny P array
    # and the output only; the dominant B*N*N adj read is unaffected.
    Fp = _round_up(Fout, _LANE)
    w_p = _pad_weight(w, Fp)

    # Reassociation (the big win): P = features @ W, so the kernel's B*N*N MXU
    # matmul produces all Fp=128 result lanes instead of Fin-of-128.
    p_x = _project_features(features, w_p, compute_dtype)       # (B, N, Fp)
    adj_x = adj.astype(compute_dtype)                           # (B, N, N)

    in_sz = jnp.dtype(compute_dtype).itemsize
    out_sz = jnp.dtype(out_dtype).itemsize
    # tm granularity: adj block sublane and output block sublane.
    req = max(_sublane(compute_dtype), _sublane(out_dtype))

    if block_bytes_budget is None:
        block_bytes_budget, vmem_cap = _device_budgets()
    else:
        _, vmem_cap = _device_budgets()

    def blk_bytes(tb_, tm_):
        return (tb_ * tm_ * N * in_sz        # adj block
                + tb_ * N * Fp * in_sz       # P block
                + tb_ * tm_ * Fp * 4         # f32 pre-tanh intermediate
                + tb_ * tm_ * Fp * out_sz)   # output block

    # --- Tile selection -----------------------------------------------------
    tb = B if batch_block is None else int(batch_block)
    tm = N if row_block is None else int(row_block)

    # Validate user-supplied blocks against (sublane, lane) tiling rules.
    assert 1 <= tb, f"batch_block must be >= 1, got {tb}"
    tb = min(tb, B)
    assert 1 <= tm <= N, f"row_block must be in [1, N], got {tm}"
    assert tm == N or tm % req == 0, (
        f"row_block must be a multiple of {req} (sublane packing for "
        f"{compute_dtype}/{out_dtype}) or equal to N={N}; got {tm}")

    if batch_block is None:
        while tb > 1 and blk_bytes(tb, tm) > block_bytes_budget:
            tb = max(1, tb // 2)
    if row_block is None and N % req == 0:
        while tm > req and blk_bytes(tb, tm) > block_bytes_budget:
            tm = max(req, _round_up(tm // 2, req))
    # TODO(synk): for very large N add a third "arbitrary" contraction axis
    # over N with an f32 VMEM accumulator instead of full-N blocks per step.

    # v7x has 2 TensorCores: guarantee >= 2 grid steps on a "parallel" axis.
    # Costs one extra ~0.35 us step on single-core v5e/v6e - negligible.
    if (batch_block is None and B > 1
            and pl.cdiv(B, tb) * pl.cdiv(N, tm) < 2):
        tb = pl.cdiv(B, 2)

    grid = (pl.cdiv(B, tb), pl.cdiv(N, tm))

    # Pallas double-buffers each input/output block; include headroom for the
    # f32 intermediate and compiler scratch, clamp by the per-gen VMEM cap.
    vmem_need = 2 * blk_bytes(tb, tm)
    vmem_limit = int(min(max(vmem_need + (4 << 20), 16 << 20), vmem_cap))

    cost = pl.CostEstimate(
        flops=2 * B * N * N * Fp,
        transcendentals=B * N * Fp,
        bytes_accessed=(B * N * N * in_sz      # adj
                        + B * N * Fp * in_sz   # P
                        + B * N * Fp * out_sz),
    )

    # Note: the P BlockSpec's index map is constant along the row-tile axis
    # (innermost grid axis), so Pallas keeps the same block resident instead
    # of re-DMA'ing it every row-tile step.
    out_padded = pl.pallas_call(
        _graph_conv_kernel,
        out_shape=jax.ShapeDtypeStruct((B, N, Fp), out_dtype),
        grid_spec=pltpu.PrefetchScalarGridSpec(
            num_scalar_prefetch=0,
            grid=grid,
            in_specs=[
                pl.BlockSpec((tb, tm, N), lambda b, m: (b, m, 0)),
                pl.BlockSpec((tb, N, Fp), lambda b, m: (b, 0, 0)),
            ],
            out_specs=pl.BlockSpec((tb, tm, Fp), lambda b, m: (b, m, 0)),
        ),
        compiler_params=pltpu.CompilerParams(
            dimension_semantics=("parallel", "parallel"),
            vmem_limit_bytes=vmem_limit,
        ),
        cost_estimate=cost,
    )(adj_x, p_x)

    return out_padded[..., :Fout] if Fp != Fout else out_padded


if __name__ == "__main__":
    # Small shapes consistent with the module: batch=2, N=16 nodes,
    # w_row (= feature dim) = 8, w_col (= output dim) = 32.
    B, N, Fin, Fout = 2, 16, 8, 32

    key = jax.random.PRNGKey(0)
    k_feat, k_adj, k_w = jax.random.split(key, 3)
    features = jax.random.normal(k_feat, (B, N, Fin), dtype=jnp.float32)
    adj = jax.random.normal(k_adj, (B, N, N), dtype=jnp.float32)
    # Deterministic stand-in for torch.randn(w_row, w_col) in __init__.
    w = jax.random.normal(k_w, (Fin, Fout), dtype=jnp.float32)

    out = jax.block_until_ready(graph_conv0(features, adj, w))
    assert out.shape == (B, N, Fout), out.shape
    assert out.dtype == features.dtype, out.dtype

    # Reference mirrors exactly what the kernel consumes (bf16-quantized adj
    # and P = features @ W_padded), evaluated in float64; tolerance covers the
    # f32 MXU accumulation and the EUP tanh.
    Fp = _round_up(Fout, _LANE)
    w_pad = _pad_weight(w, Fp)
    p_q = np.asarray(
        _project_features(features, w_pad, jnp.bfloat16).astype(jnp.float32),
        np.float64)
    adj_q = np.asarray(adj.astype(jnp.bfloat16).astype(jnp.float32),
                       np.float64)
    ref = np.tanh(np.einsum("bmn,bnf->bmf", adj_q, p_q))[..., :Fout]

    err = float(np.max(np.abs(np.asarray(out, np.float64) - ref)))
    assert err < 2e-2, f"max abs err = {err}"
    print("KERNEL_OK")
</pallas_src>

<mosaic_0001>
module attributes {stable_mosaic.version = 11 : i64} {
  func.func @_graph_conv_kernel(%arg0: i32, %arg1: i32, %arg2: memref<1x16x16xbf16, #tpu.memory_space<vmem>>, %arg3: memref<1x16x128xbf16, #tpu.memory_space<vmem>>, %arg4: memref<1x16x128xf32, #tpu.memory_space<vmem>>) attributes {dimension_semantics = [#tpu.dimension_semantics<parallel>, #tpu.dimension_semantics<parallel>], iteration_bounds = array<i64: 2, 1>, scalar_prefetch = 0 : i64, scratch_operands = 0 : i64, tpu.core_type = #tpu.core_type<tc>, window_params = [{transform_indices = @transform_0, window_bounds = array<i64: 1, 16, 16>}, {transform_indices = @transform_1, window_bounds = array<i64: 1, 16, 128>}, {transform_indices = @transform_2, window_bounds = array<i64: 1, 16, 128>}]} {
    %c0 = arith.constant 0 : index
    %c0_0 = arith.constant 0 : index
    %c0_1 = arith.constant 0 : index
    %0 = vector.load %arg2[%c0, %c0_0, %c0_1] : memref<1x16x16xbf16, #tpu.memory_space<vmem>>, vector<1x16x16xbf16>
    %c0_2 = arith.constant 0 : index
    %c0_3 = arith.constant 0 : index
    %c0_4 = arith.constant 0 : index
    %1 = vector.load %arg3[%c0_2, %c0_3, %c0_4] : memref<1x16x128xbf16, #tpu.memory_space<vmem>>, vector<1x16x128xbf16>
    "tpu.trace_start"() <{level = 10 : i32, message = "bmn,bnf->bmf"}> : () -> ()
    %cst = arith.constant dense<0.000000e+00> : vector<1x16x128xf32>
    %2 = tpu.matmul %0, %1, %cst {dimension_numbers = #tpu.dot_dimension_numbers<[2], [1], [1], [2], [0, 0, 0, 1, 1, 2], [0], [0]>} : vector<1x16x16xbf16>, vector<1x16x128xbf16>, vector<1x16x128xf32> -> vector<1x16x128xf32>
    "tpu.trace_stop"() : () -> ()
    %3 = math.tanh %2 : vector<1x16x128xf32>
    %c0_5 = arith.constant 0 : index
    %c0_6 = arith.constant 0 : index
    %c0_7 = arith.constant 0 : index
    %4 = vector.load %arg4[%c0_5, %c0_6, %c0_7] : memref<1x16x128xf32, #tpu.memory_space<vmem>>, vector<1x16x128xf32>
    tpu.vector_store %arg4[%c0_5, %c0_6, %c0_7], %3 {strides = array<i32>} : memref<1x16x128xf32, #tpu.memory_space<vmem>>, vector<1x16x128xf32>,
    return
  }
  func.func @transform_0(%arg0: i32, %arg1: i32) -> (i32, i32, i32) {
    %c0_i32 = arith.constant 0 : i32
    %c0_i32_0 = arith.constant 0 : i32
    return %arg0, %arg1, %c0_i32 : i32, i32, i32
  }
  func.func @transform_1(%arg0: i32, %arg1: i32) -> (i32, i32, i32) {
    %c0_i32 = arith.constant 0 : i32
    %c0_i32_0 = arith.constant 0 : i32
    %c0_i32_1 = arith.constant 0 : i32
    return %arg0, %c0_i32, %c0_i32_0 : i32, i32, i32
  }
  func.func @transform_2(%arg0: i32, %arg1: i32) -> (i32, i32, i32) {
    %c0_i32 = arith.constant 0 : i32
    %c0_i32_0 = arith.constant 0 : i32
    return %arg0, %arg1, %c0_i32 : i32, i32, i32
  }
}

</mosaic_0001>

<llo_original>
// kernel: tpu_custom_call.1
$region0: #{tpu_custom_call.1}
  #allocation0 [shape = 'u32[]', space=smem, size = 0x4, offset = 0x4, fixed_abs, tag = 'smem constant byte address 0x4 - core index']
  #allocation1 [shape = 'u32[144,128]{1,0:T(1,128)}', space=vmem, size = 0x12000, scoped, tag = 'internal scratch']
  %s0 = inlined_call_operand.hbm [shape: bf16[2,16,16], index: 0, kind: input, shape index: {}]
  %s1 = inlined_call_operand.hbm [shape: bf16[2,16,128], index: 1, kind: input, shape index: {}]
  %s2 = inlined_call_operand.hbm [shape: f32[2,16,128], index: 2, kind: output, shape index: {}]
  %s3 = sld [smem:[#allocation0]]
  $region49: #{tpu_custom_call.1} parent=0
    _
  %s5 = ssub.s32 1, %s3
  %s6 = scalar_select 0, %s5, %s3
  $region1: #{tpu_custom_call.1} parent=0
    #allocation2 [shape = 'u8[8192]{0}', space=vmem, size = 0x2000, scoped, tag = 'input window, operand 0']
    #allocation3 [shape = 's32[2]{0}', space=sflag, size = 0x8, scoped, tag = 'scoped memory for tpu_custom_call.1']
    #allocation4 [shape = 's32[2]{0}', space=sflag, size = 0x8, scoped, tag = 'scoped memory for tpu_custom_call.1']
    #allocation5 [shape = 'u8[8192]{0}', space=vmem, size = 0x2000, scoped, tag = 'input window, operand 1']
    #allocation6 [shape = 's32[2]{0}', space=sflag, size = 0x8, scoped, tag = 'scoped memory for tpu_custom_call.1']
    #allocation7 [shape = 'u8[16384]{0}', space=vmem, size = 0x4000, scoped, tag = 'output window, operand 0']
    %7 = vsyncpa [#allocation3], 0
    %s8 = scalar_lea.sflag [#allocation3], 1
    %9 = vsyncpa %s8, 0
    %10 = vsyncpa [#allocation6], 0
    %s11 = scalar_lea.sflag [#allocation6], 1
    %12 = vsyncpa %s11, 0
    %13 = vsyncpa [#allocation4], 0
    %s14 = scalar_lea.sflag [#allocation4], 1
    %15 = vsyncpa %s14, 0
    loop: start=0, step=1, limit=4
    $region2: #{tpu_custom_call.1} parent=1 // loop_pre_header
      _
    $region3: #{tpu_custom_call.1} parent=1 // loop_header
      %s17 = sphi 0, %s21
      %p18 = scmp.ge.s32.totalorder %s17, 4
      %s24 = sphi 0, %s36
      %s25 = sphi 0, %s32
      %s26 = sphi 0, %s24
      %s27 = sphi 0, %s25
      %s28 = sphi 0, %s26
      %s29 = sphi 0, %s27
      %s41 = sphi 0, %s43
      %s44 = sphi 0, %s41
      %s45 = sphi 0, %s44
      %s61 = sphi 0, %s45
      %s67 = sphi 0, %s69
      %s70 = sphi 0, %s67
      %s71 = sphi 0, %s70
      %s87 = sphi 0, %s71
      %s95 = sphi 0, %s97
      %s98 = sphi 0, %s95
      %s99 = sphi 0, %s98
      %s115 = sphi 0, %s99
    $region4: #{tpu_custom_call.1} parent=1 // loop_header_branch
      %20 = sbr.rel (%p18) target = $region8
    $region5: #{tpu_custom_call.1} parent=1 // loop_body
      %s22 = ssub.s32 %s17, 1
      %s23 = ssub.s32 %s17, 2
      %s30 = sadd.s32 1, %s25
      %p31 = scmp.ge.s32.totalorder %s30, 1
      %s32 = scalar_select %p31, 0, %s30
      %s33 = sadd.s32 1, %s24
      %s34 = scalar_select %p31, %s33, %s24
      %p35 = scmp.ge.s32.totalorder %s34, 2
      %s36 = scalar_select %p35, 0, %s34
      %s37 = ssub.s32 %s24, %s36
      %s38 = ssub.s32 %s25, %s32
      %s39 = sor.u32 %s37, %s38
      %p40 = scmp.eq.s32.totalorder %s39, 0
      %s42 = sadd.s32 %s41, 1
      %s43 = scalar_select %p40, %s41, %s42
      %p46 = pneg %p40
      %p47 = scmp.eq.s32.totalorder %s17, 1
      %p48 = por %p46, %p47
      %p49 = scmp.ne.s32.totalorder %s41, %s44
      %p50 = scmp.eq.s32.totalorder %s17, 0
      %p51 = por %p49, %p50
      %p52 = scmp.ne.s32.totalorder %s41, %s44
      %p53 = scmp.eq.s32.totalorder %s22, 1
      %p54 = por %p52, %p53
      %p55 = scmp.ne.s32.totalorder %s44, %s45
      %p56 = scmp.eq.s32.totalorder %s22, 0
      %p57 = por %p55, %p56
      %p58 = scmp.ne.s32.totalorder %s44, %s45
      %p59 = scmp.eq.s32.totalorder %s23, 1
      %p60 = por %p58, %p59
      %p62 = scmp.ne.s32.totalorder %s45, %s61
      %p63 = scmp.eq.s32.totalorder %s23, 0
      %p64 = por %p62, %p63
      %s65 = ssub.s32 %s24, %s36
      %p66 = scmp.eq.s32.totalorder %s65, 0
      %s68 = sadd.s32 %s67, 1
      %s69 = scalar_select %p66, %s67, %s68
      %p72 = pneg %p66
      %p73 = scmp.eq.s32.totalorder %s17, 1
      %p74 = por %p72, %p73
      %p75 = scmp.ne.s32.totalorder %s67, %s70
      %p76 = scmp.eq.s32.totalorder %s17, 0
      %p77 = por %p75, %p76
      %p78 = scmp.ne.s32.totalorder %s67, %s70
      %p79 = scmp.eq.s32.totalorder %s22, 1
      %p80 = por %p78, %p79
      %p81 = scmp.ne.s32.totalorder %s70, %s71
      %p82 = scmp.eq.s32.totalorder %s22, 0
      %p83 = por %p81, %p82
      %p84 = scmp.ne.s32.totalorder %s70, %s71
      %p85 = scmp.eq.s32.totalorder %s23, 1
      %p86 = por %p84, %p85
      %p88 = scmp.ne.s32.totalorder %s71, %s87
      %p89 = scmp.eq.s32.totalorder %s23, 0
      %p90 = por %p88, %p89
      %s91 = ssub.s32 %s24, %s36
      %s92 = ssub.s32 %s25, %s32
      %s93 = sor.u32 %s91, %s92
      %p94 = scmp.eq.s32.totalorder %s93, 0
      %s96 = sadd.s32 %s95, 1
      %s97 = scalar_select %p94, %s95, %s96
      %p100 = pneg %p94
      %p101 = scmp.eq.s32.totalorder %s17, 1
      %p102 = por %p100, %p101
      %p103 = scmp.ne.s32.totalorder %s95, %s98
      %p104 = scmp.eq.s32.totalorder %s17, 0
      %p105 = por %p103, %p104
      %p106 = scmp.ne.s32.totalorder %s95, %s98
      %p107 = scmp.eq.s32.totalorder %s22, 1
      %p108 = por %p106, %p107
      %p109 = scmp.ne.s32.totalorder %s98, %s99
      %p110 = scmp.eq.s32.totalorder %s22, 0
      %p111 = por %p109, %p110
      %p112 = scmp.ne.s32.totalorder %s98, %s99
      %p113 = scmp.eq.s32.totalorder %s23, 1
      %p114 = por %p112, %p113
      %p116 = scmp.ne.s32.totalorder %s99, %s115
      %p117 = scmp.eq.s32.totalorder %s23, 0
      %p118 = por %p116, %p117
      %p119 = scmp.le.s32.totalorder 1, %s17
      %p120 = scmp.lt.s32.totalorder %s17, 3
      %p121 = pnand %p119, %p120
      %p122 = pneg %p121
      // Predicated region
      $region9: #{tpu_custom_call.1} parent=5 // pred_check
        _
      $region10: #{tpu_custom_call.1} parent=5 // pred_check_branch
        %124 = sbr.rel (%p121) target = $region12
      $region11: #{tpu_custom_call.1} parent=5 // pred_region
        %s125 = ssub.s32 %s17, 1
      $region12: #{tpu_custom_call.1} parent=5 // pred_fallthru
        _
      %p126 = scmp.lt.s32.totalorder %s17, 2
      // Predicated region
      $region13: #{tpu_custom_call.1} parent=5 // pred_check
        %p127 = pneg %p126
      $region14: #{tpu_custom_call.1} parent=5 // pred_check_branch
        %129 = sbr.rel (%p127) target = $region16
      $region15: #{tpu_custom_call.1} parent=5 // pred_region
        // Predicated region
        $region17: #{tpu_custom_call.1} parent=15 // pred_check
          %p130 = pneg %p51
        $region18: #{tpu_custom_call.1} parent=15 // pred_check_branch
          %132 = sbr.rel (%p130) target = $region20
        $region19: #{tpu_custom_call.1} parent=15 // pred_region
          %s133 = sand.u32 %s41, 1
          %s134 = scalar_lea.sflag [#allocation3], %s133
          %s135 = sand.u32 %s41, 1
          %s136 = smul.addr %s135, 8
          %s137 = scalar_lea.vmem [#allocation2], %s136
          %s138 = smul.u32 2, %s25
          %s140 = ssub.s32 128, 128
          %141 = vsyncadd %s134, %s140
          %s142 = smul.addr %s24, 2
          %s143 = sadd.s32 %s138, %s142
          %s144 = smul.addr %s143, 64
          %s145 = scalar_lea.hbm %s0, %s144
          %s146 = sshll.u32 %s137, 4
          %s147 = int_to_ptr.vmem [resolvable:$true] %s146
          %152 = dma.hbm_to_vmem [thread:$0]  %s145, 128, %s147, %s134, 64, 64, 4
        $region20: #{tpu_custom_call.1} parent=15 // pred_fallthru
          _
        // Predicated region
        $region21: #{tpu_custom_call.1} parent=15 // pred_check
          %p153 = pneg %p77
        $region22: #{tpu_custom_call.1} parent=15 // pred_check_branch
          %155 = sbr.rel (%p153) target = $region24
        $region23: #{tpu_custom_call.1} parent=15 // pred_region
          %s156 = sand.u32 %s67, 1
          %s157 = scalar_lea.sflag [#allocation6], %s156
          %s158 = sand.u32 %s67, 1
          %s159 = smul.addr %s158, 8
          %s160 = scalar_lea.vmem [#allocation5], %s159
          %s162 = ssub.s32 128, 128
          %163 = vsyncadd %s157, %s162
          %s164 = smul.addr %s24, 2
          %s165 = smul.addr %s164, 64
          %s166 = scalar_lea.hbm %s1, %s165
          %s167 = sshll.u32 %s160, 4
          %s168 = int_to_ptr.vmem [resolvable:$true] %s167
          %173 = dma.hbm_to_vmem [thread:$0]  %s166, 128, %s168, %s157, 64, 64, 4
        $region24: #{tpu_custom_call.1} parent=15 // pred_fallthru
          _
      $region16: #{tpu_custom_call.1} parent=5 // pred_fallthru
        _
      %p174 = scmp.le.s32.totalorder 1, %s17
      %p175 = scmp.lt.s32.totalorder %s17, 3
      %p176 = pnand %p174, %p175
      %p177 = pneg %p176
      // Predicated region
      $region25: #{tpu_custom_call.1} parent=5 // pred_check
        _
      $region26: #{tpu_custom_call.1} parent=5 // pred_check_branch
        %179 = sbr.rel (%p176) target = $region28
      $region27: #{tpu_custom_call.1} parent=5 // pred_region
        %s180 = ssub.s32 %s17, 1
        %s181 = sand.u32 %s44, 1
        %s182 = scalar_lea.sflag [#allocation3], %s181
        %s183 = sand.u32 %s44, 1
        %s184 = smul.addr %s183, 8
        %s185 = scalar_lea.vmem [#allocation2], %s184
        // Predicated region
        $region29: #{tpu_custom_call.1} parent=27 // pred_check
          %p186 = pneg %p57
        $region30: #{tpu_custom_call.1} parent=27 // pred_check_branch
          %188 = sbr.rel (%p186) target = $region32
        $region31: #{tpu_custom_call.1} parent=27 // pred_region
          %189 = dma.done %s182, 128
        $region32: #{tpu_custom_call.1} parent=27 // pred_fallthru
          _
        %s190 = sand.u32 %s70, 1
        %s191 = scalar_lea.sflag [#allocation6], %s190
        %s192 = sand.u32 %s70, 1
        %s193 = smul.addr %s192, 8
        %s194 = scalar_lea.vmem [#allocation5], %s193
        // Predicated region
        $region33: #{tpu_custom_call.1} parent=27 // pred_check
          %p195 = pneg %p83
        $region34: #{tpu_custom_call.1} parent=27 // pred_check_branch
          %197 = sbr.rel (%p195) target = $region36
        $region35: #{tpu_custom_call.1} parent=27 // pred_region
          %198 = dma.done %s191, 128
        $region36: #{tpu_custom_call.1} parent=27 // pred_fallthru
          _
        %s199 = sand.u32 %s44, 1
        %s200 = scalar_lea.sflag [#allocation3], %s199
        %s201 = sand.u32 %s44, 1
        %s202 = smul.addr %s201, 8
        %s203 = scalar_lea.vmem [#allocation2], %s202
        %p204 = pneg %p57
        %p205 = pneg %p54
        %s206 = sand.u32 %s70, 1
        %s207 = scalar_lea.sflag [#allocation6], %s206
        %s208 = sand.u32 %s70, 1
        %s209 = smul.addr %s208, 8
        %s210 = scalar_lea.vmem [#allocation5], %s209
        %p211 = pneg %p83
        %p212 = pneg %p80
        %p213 = pneg %p111
        %p214 = pneg %p108
        %s215 = sand.u32 %s98, 1
        %s216 = scalar_lea.sflag [#allocation4], %s215
        %s217 = sand.u32 %s98, 1
        %s218 = smul.addr %s217, 16
        %s219 = scalar_lea.vmem [#allocation7], %s218
        %s220 = smul.u32 2, %s27
        %s221 = smul.u32 2, %s27
        %v223 = vld [vmem:[%s185] sm:$0xf]
        %v224 = vld [vmem:[%s185 + $0x4] sm:$0xf]
        %v225 = vld [vmem:[%s194] sm:$0xf]
        %v226 = vld [vmem:[%s194 + $0x4] sm:$0xf]
        %v229 = vunpack.c.l.b16 %v223
        %v230 = vunpack.c.l.b16 %v224
        %v231 = vpack.c.b16 %v230, %v229
        %v234 = vunpack.c.l.b16 %v225
        %v235 = vunpack.c.l.b16 %v226
        %v236 = vpack.c.b16 %v235, %v234
        %vm238 = vcmask 130048
        %v240 = vsel %vm238, %v231, 0
        %242 = vmatprep.subr.bf16.mxu0 0
        %243 = vmatpush1.bf16.msra.mxu0 0
        %244 = vmatprep.subr.bf16.mxu0 0
        %245 = vmatpush1.bf16.msra.mxu0 0
        %246 = vmatprep.subr.bf16.mxu0 0
        %247 = vmatpush1.bf16.msra.mxu0 0
        %248 = vmatprep.subr.bf16.mxu0 0
        %249 = vmatpush1.bf16.msra.mxu0 0
        %250 = vmatprep.subr.bf16.mxu0 0
        %251 = vmatpush1.bf16.msra.mxu0 0
        %252 = vmatprep.subr.bf16.mxu0 0
        %253 = vmatpush1.bf16.msra.mxu0 0
        %254 = vmatprep.subr.bf16.mxu0 0
        %255 = vmatpush1.bf16.msra.mxu0 0
        %256 = vmatprep.subr.bf16.mxu0 0
        %257 = vmatpush1.bf16.msra.mxu0 %v236
        %258 = vmatprep.subr.bf16.mxu0 0
        %259 = vmatpush2.bf16.msra.mxu0 0
        %260 = vmatprep.subr.bf16.mxu0 0
        %261 = vmatpush2.bf16.msra.mxu0 0
        %262 = vmatprep.subr.bf16.mxu0 0
        %263 = vmatpush2.bf16.msra.mxu0 0
        %264 = vmatprep.subr.bf16.mxu0 0
        %265 = vmatpush2.bf16.msra.mxu0 0
        %266 = vmatprep.subr.bf16.mxu0 0
        %267 = vmatpush2.bf16.msra.mxu0 0
        %268 = vmatprep.subr.bf16.mxu0 0
        %269 = vmatpush2.bf16.msra.mxu0 0
        %270 = vmatprep.subr.bf16.mxu0 0
        %271 = vmatpush2.bf16.msra.mxu0 0
        %272 = vmatprep.subr.bf16.mxu0 0
        %273 = vmatpush2.bf16.msra.mxu0 0
        %274 = vmatprep.mubr.bf16.mxu0 0
        %275 = vmatmul.mubr.bf16.gmra.mxu0 %v240
        %v276 = vpop.f32.mrf.mxu0
        %v277 = vadd.f32 0.0, %v276
        %v278 = vpop.f32.mrf.mxu0
        %v279 = vpop.f32.mrf.mxu0
        %v280 = vadd.f32 0.0, %v279
        %v281 = vpop.f32.mrf.mxu0
        %282 = vdwg.mxu0
        %v283 = vtanh.pop %v277
        %v284 = vtanh.pop %v280
        %285 = vst [vmem:[%s219] sm:$0xff] %v283
        %286 = vst [vmem:[%s219 + $0x8] sm:$0xff] %v284
        %s287 = sand.u32 %s98, 1
        %s288 = scalar_lea.sflag [#allocation4], %s287
        %s289 = sand.u32 %s98, 1
        %s290 = smul.addr %s289, 16
        %s291 = scalar_lea.vmem [#allocation7], %s290
        // Predicated region
        $region37: #{tpu_custom_call.1} parent=27 // pred_check
          %p292 = pneg %p108
        $region38: #{tpu_custom_call.1} parent=27 // pred_check_branch
          %294 = sbr.rel (%p292) target = $region40
        $region39: #{tpu_custom_call.1} parent=27 // pred_region
          %s295 = smul.u32 2, %s27
          %s297 = ssub.s32 256, 256
          %298 = vsyncadd %s288, %s297
          %s299 = smul.addr %s26, 2
          %s300 = sadd.s32 %s295, %s299
          %s301 = smul.addr %s300, 128
          %s302 = scalar_lea.hbm %s2, %s301
          %s303 = sshll.u32 %s291, 4
          %s304 = int_to_ptr.vmem [resolvable:$true] %s303
          %309 = dma.vmem_to_hbm [thread:$0]  %s304, 256, %s302, %s288, 128, 128, 8
        $region40: #{tpu_custom_call.1} parent=27 // pred_fallthru
          _
      $region28: #{tpu_custom_call.1} parent=5 // pred_fallthru
        _
      %p310 = scmp.le.s32.totalorder 2, %s17
      // Predicated region
      $region41: #{tpu_custom_call.1} parent=5 // pred_check
        %p311 = pneg %p310
      $region42: #{tpu_custom_call.1} parent=5 // pred_check_branch
        %313 = sbr.rel (%p311) target = $region44
      $region43: #{tpu_custom_call.1} parent=5 // pred_region
        %s314 = ssub.s32 %s17, 2
        // Predicated region
        $region45: #{tpu_custom_call.1} parent=43 // pred_check
          %p315 = pneg %p114
        $region46: #{tpu_custom_call.1} parent=43 // pred_check_branch
          %317 = sbr.rel (%p315) target = $region48
        $region47: #{tpu_custom_call.1} parent=43 // pred_region
          %s318 = sand.u32 %s99, 1
          %s319 = scalar_lea.sflag [#allocation4], %s318
          %s320 = sand.u32 %s99, 1
          %s321 = smul.addr %s320, 16
          %s322 = scalar_lea.vmem [#allocation7], %s321
          %323 = dma.done %s319, 256
        $region48: #{tpu_custom_call.1} parent=43 // pred_fallthru
          _
      $region44: #{tpu_custom_call.1} parent=5 // pred_fallthru
        _
    $region6: #{tpu_custom_call.1} parent=1 // loop_footer
      %s21 = sadd.s32 1, %s17
    $region7: #{tpu_custom_call.1} parent=1 // loop_footer_branch
      %16 = sbr.rel target = $region3
    $region8: #{tpu_custom_call.1} parent=1 // loop_exit
      _
    %324 = vsyncpa [#allocation3], 1
    %s325 = scalar_lea.sflag [#allocation3], 1
    %326 = vsyncpa %s325, 1
    %327 = vsyncpa [#allocation6], 1
    %s328 = scalar_lea.sflag [#allocation6], 1
    %329 = vsyncpa %s328, 1
    %330 = vsyncpa [#allocation4], 1
    %s331 = scalar_lea.sflag [#allocation4], 1
    %332 = vsyncpa %s331, 1

</llo_original>
